<compile_context>
chip_gen: v5e
topology: v5e:2x2
jax: 0.10.0
libtpu: 0.0.40
codegen_flags: <defaults>
</compile_context>

<pallas_src>
import functools

import jax
import jax.numpy as jnp
from jax.experimental import pallas as pl
from jax.experimental.pallas import tpu as pltpu


def _self_attention_kernel(x_ref, w1t_ref, w2t_ref, o_ref, *, exact_softmax):
    # x_ref:   (block_b * n, d_in)   flattened batch-tile of H (flatten done in wrapper)
    # w1t_ref: (d_in, d_a)           W_s1^T (pre-transposed in the wrapper)
    # w2t_ref: (d_a, r)              W_s2^T (pre-transposed in the wrapper)
    # o_ref:   (block_b, r, d_in)
    bt, r, d_in = o_ref.shape
    n = x_ref.shape[0] // bt

    x2d = x_ref[...]                                  # (bt*n, d_in), streamed dtype
    w1t = w1t_ref[...]                                # (d_in, d_a), streamed dtype
    w2t = w2t_ref[...].astype(jnp.float32)            # (d_a, r): tiny, keep f32 for accuracy

    # y1 = tanh(H @ W_s1^T): one MXU-filling matmul over all bt*n rows, f32 accumulation.
    y1 = jnp.tanh(jnp.dot(x2d, w1t, preferred_element_type=jnp.float32))  # (bt*n, d_a) f32

    # scores = y1 @ W_s2^T, kept (rows, r); softmax is over n, so no (n, r) -> (r, n)
    # score transpose is ever materialized.
    scores = jnp.dot(y1, w2t, preferred_element_type=jnp.float32)         # (bt*n, r) f32
    scores = scores.reshape(bt, n, r)                                     # (bt, n, r)

    # Numerically-stable softmax over the sequence axis (axis=1).
    m = jnp.max(scores, axis=1, keepdims=True)                            # (bt, 1, r)
    e = jnp.exp(scores - m)                                               # (bt, n, r)
    denom = jnp.sum(e, axis=1, keepdims=True)                             # (bt, 1, r)
    if exact_softmax:
        a = e / denom
    else:
        a = e * pl.reciprocal(denom, approx=True)                         # EUP slot, ~free
    # a stays f32 for the final matmul (better accuracy, negligible cost).

    # M = A @ H as ONE batched contraction and ONE full-block unmasked store.
    x3 = x2d.reshape(bt, n, d_in).astype(jnp.float32)                     # (bt, n, d_in) f32
    out = jnp.einsum("bnr,bnd->brd", a, x3,
                     preferred_element_type=jnp.float32)                  # (bt, r, d_in)
    o_ref[...] = out.astype(o_ref.dtype)


@functools.partial(jax.jit,
                   static_argnames=("block_b", "compute_dtype", "exact_softmax"))
def self_attention(x, w1, w2, *, block_b=None, compute_dtype=None, exact_softmax=False):
    """x: (B, n, input_size); w1: (d_a, input_size); w2: (r, d_a) -> (B, r, input_size)."""
    B, n, d_in = x.shape
    d_a = w1.shape[0]
    r = w2.shape[0]
    out_dtype = x.dtype

    if compute_dtype is not None:
        # bf16 streamed operands halve HBM traffic (pays off on v5e/v6e/v7x alike);
        # all accumulation / tanh / softmax stays f32 inside the kernel.
        x = x.astype(compute_dtype)
        w1 = w1.astype(compute_dtype)
        w2 = w2.astype(compute_dtype)

    if block_b is None:
        # HBM-bound kernel: target >= ~512 flattened rows (block_b*n) per grid step to
        # approach the HBM roofline and amortize the ~0.35us/step grid overhead.
        block_b = max(1, min(B, pl.cdiv(512, n)))
        # Keep a grid of length >= 2 so the "parallel" batch axis can split over the
        # two v7x TensorCores.
        if B >= 2:
            block_b = min(block_b, (B + 1) // 2)
        # Cap the double-buffered per-step VMEM footprint (~40 MiB) for v7x's 64 MiB/TC.
        in_item = jnp.dtype(x.dtype).itemsize
        out_item = jnp.dtype(out_dtype).itemsize
        def _footprint(bb):
            return 2 * bb * n * d_in * in_item + 2 * bb * r * d_in * out_item
        while block_b > 1 and _footprint(block_b) > 40 * 1024 * 1024:
            block_b = (block_b + 1) // 2

    num_steps = pl.cdiv(B, block_b)
    Bp = num_steps * block_b
    if Bp != B:
        # Zero-padded sequences give a uniform softmax and a zero output row (no NaNs);
        # the padded rows are sliced off below.
        x = jnp.pad(x, ((0, Bp - B), (0, 0), (0, 0)))

    # Free layout plumbing in XLA: flatten batch*seq and pre-transpose the weights once,
    # instead of reshaping / transposing inside every grid step.
    x_flat = x.reshape(Bp * n, d_in)
    w1t = w1.T                                   # (d_in, d_a)
    w2t = w2.T                                   # (d_a, r)

    kernel = functools.partial(_self_attention_kernel, exact_softmax=exact_softmax)
    out = pl.pallas_call(
        kernel,
        out_shape=jax.ShapeDtypeStruct((Bp, r, d_in), out_dtype),
        grid_spec=pltpu.PrefetchScalarGridSpec(
            num_scalar_prefetch=0,
            grid=(num_steps,),
            in_specs=[
                pl.BlockSpec((block_b * n, d_in), lambda i: (i, 0)),
                # Constant index_map -> fetched once; single-buffer to save VMEM.
                pl.BlockSpec((d_in, d_a), lambda i: (0, 0),
                             pipeline_mode=pl.Buffered(1)),
                pl.BlockSpec((d_a, r), lambda i: (0, 0),
                             pipeline_mode=pl.Buffered(1)),
            ],
            out_specs=pl.BlockSpec((block_b, r, d_in), lambda i: (i, 0, 0)),
        ),
        compiler_params=pltpu.CompilerParams(
            dimension_semantics=("parallel",),
            vmem_limit_bytes=64 * 1024 * 1024,
        ),
    )(x_flat, w1t, w2t)
    return out[:B]


def self_attention_ref(x, w1, w2):
    y1 = jnp.tanh(jnp.einsum("bnd,ad->bna", x, w1))
    att = jnp.einsum("bna,ra->brn", y1, w2)
    att = jax.nn.softmax(att, axis=-1)
    return jnp.einsum("brn,bnd->brd", att, x)


if __name__ == "__main__":
    # Small, module-consistent shapes (B chosen so the batched grid has >= 2 steps).
    B, n = 8, 8          # batch, sequence length
    input_size = 32      # 2u
    attention_size = 16  # d_a
    attention_hops = 4   # r

    key = jax.random.PRNGKey(0)
    kx, k1, k2 = jax.random.split(key, 3)

    x = jax.random.normal(kx, (B, n, input_size), dtype=jnp.float32)
    # deterministic Linear-style init (uniform in +/- 1/sqrt(fan_in)), no bias
    bound1 = 1.0 / (input_size ** 0.5)
    bound2 = 1.0 / (attention_size ** 0.5)
    w1 = jax.random.uniform(k1, (attention_size, input_size), jnp.float32,
                            minval=-bound1, maxval=bound1)
    w2 = jax.random.uniform(k2, (attention_hops, attention_size), jnp.float32,
                            minval=-bound2, maxval=bound2)

    ref = self_attention_ref(x, w1, w2)

    # f32 path, explicit block_b=4 -> grid of 2 (exercises the "parallel" batch axis).
    out = jax.block_until_ready(self_attention(x, w1, w2, block_b=4))
    assert out.shape == (B, attention_hops, input_size)
    assert jnp.allclose(out, ref, atol=5e-3, rtol=5e-3)

    # Exact-divide softmax fallback + automatic block_b heuristic.
    out_exact = jax.block_until_ready(self_attention(x, w1, w2, exact_softmax=True))
    assert out_exact.shape == (B, attention_hops, input_size)
    assert jnp.allclose(out_exact, ref, atol=5e-3, rtol=5e-3)

    # bf16 streamed-operand path (halved HBM traffic; f32 accumulation / softmax inside).
    out_bf16 = jax.block_until_ready(
        self_attention(x, w1, w2, compute_dtype=jnp.bfloat16))
    assert out_bf16.shape == (B, attention_hops, input_size)
    assert jnp.allclose(out_bf16, ref, atol=5e-2, rtol=5e-2)

    print("KERNEL_OK")
</pallas_src>

<mosaic_0001>
module attributes {stable_mosaic.version = 11 : i64} {
  func.func @_self_attention_kernel(%arg0: i32, %arg1: memref<32x32xf32, #tpu.memory_space<vmem>>, %arg2: memref<32x16xf32, #tpu.memory_space<vmem>>, %arg3: memref<16x4xf32, #tpu.memory_space<vmem>>, %arg4: memref<4x4x32xf32, #tpu.memory_space<vmem>>) attributes {dimension_semantics = [#tpu.dimension_semantics<parallel>], iteration_bounds = array<i64: 2>, scalar_prefetch = 0 : i64, scratch_operands = 0 : i64, tpu.core_type = #tpu.core_type<tc>, window_params = [{transform_indices = @transform_0, window_bounds = array<i64: 32, 32>}, {pipeline_mode = #tpu.pipeline_mode<synchronous>, transform_indices = @transform_1, window_bounds = array<i64: 32, 16>}, {pipeline_mode = #tpu.pipeline_mode<synchronous>, transform_indices = @transform_2, window_bounds = array<i64: 16, 4>}, {transform_indices = @transform_3, window_bounds = array<i64: 4, 4, 32>}]} {
    %c0 = arith.constant 0 : index
    %c0_0 = arith.constant 0 : index
    %0 = vector.load %arg1[%c0, %c0_0] : memref<32x32xf32, #tpu.memory_space<vmem>>, vector<32x32xf32>
    %c0_1 = arith.constant 0 : index
    %c0_2 = arith.constant 0 : index
    %1 = vector.load %arg2[%c0_1, %c0_2] : memref<32x16xf32, #tpu.memory_space<vmem>>, vector<32x16xf32>
    %c0_3 = arith.constant 0 : index
    %c0_4 = arith.constant 0 : index
    %2 = vector.load %arg3[%c0_3, %c0_4] : memref<16x4xf32, #tpu.memory_space<vmem>>, vector<16x4xf32>
    %cst = arith.constant dense<0.000000e+00> : vector<32x16xf32>
    %3 = tpu.matmul %0, %1, %cst {dimension_numbers = #tpu.dot_dimension_numbers<[1], [0], [0], [1], [0, 0, 1, 1], [], []>} : vector<32x32xf32>, vector<32x16xf32>, vector<32x16xf32> -> vector<32x16xf32>
    %4 = math.tanh %3 : vector<32x16xf32>
    %cst_5 = arith.constant dense<0.000000e+00> : vector<32x4xf32>
    %5 = tpu.matmul %4, %2, %cst_5 {dimension_numbers = #tpu.dot_dimension_numbers<[1], [0], [0], [1], [0, 0, 1, 1], [], []>} : vector<32x16xf32>, vector<16x4xf32>, vector<32x4xf32> -> vector<32x4xf32>
    %6 = vector.shape_cast %5 : vector<32x4xf32> to vector<4x8x4xf32>
    %cst_6 = arith.constant dense<0xFF800000> : vector<4x4xf32>
    %7 = vector.multi_reduction <maximumf>, %6, %cst_6 [1] : vector<4x8x4xf32> to vector<4x4xf32>
    %8 = vector.shape_cast %7 : vector<4x4xf32> to vector<4x1x4xf32>
    %9 = vector.broadcast %8 : vector<4x1x4xf32> to vector<4x8x4xf32>
    %10 = arith.subf %6, %9 : vector<4x8x4xf32>
    %11 = math.exp %10 : vector<4x8x4xf32>
    %cst_7 = arith.constant dense<0.000000e+00> : vector<4x4xf32>
    %12 = vector.multi_reduction <add>, %11, %cst_7 [1] : vector<4x8x4xf32> to vector<4x4xf32>
    %13 = vector.shape_cast %12 : vector<4x4xf32> to vector<4x1x4xf32>
    %14 = tpu.reciprocal %13 {approx = true} : vector<4x1x4xf32> -> vector<4x1x4xf32>
    %15 = vector.broadcast %14 : vector<4x1x4xf32> to vector<4x8x4xf32>
    %16 = arith.mulf %11, %15 : vector<4x8x4xf32>
    %17 = vector.shape_cast %0 : vector<32x32xf32> to vector<4x8x32xf32>
    "tpu.trace_start"() <{level = 10 : i32, message = "bnr,bnd->brd"}> : () -> ()
    %cst_8 = arith.constant dense<0.000000e+00> : vector<4x4x32xf32>
    %18 = tpu.matmul %16, %17, %cst_8 {dimension_numbers = #tpu.dot_dimension_numbers<[1], [1], [2], [2], [0, 0, 0, 2, 1, 2], [0], [0]>} : vector<4x8x4xf32>, vector<4x8x32xf32>, vector<4x4x32xf32> -> vector<4x4x32xf32>
    "tpu.trace_stop"() : () -> ()
    %c0_9 = arith.constant 0 : index
    %c0_10 = arith.constant 0 : index
    %c0_11 = arith.constant 0 : index
    %19 = vector.load %arg4[%c0_9, %c0_10, %c0_11] : memref<4x4x32xf32, #tpu.memory_space<vmem>>, vector<4x4x32xf32>
    tpu.vector_store %arg4[%c0_9, %c0_10, %c0_11], %18 {strides = array<i32>} : memref<4x4x32xf32, #tpu.memory_space<vmem>>, vector<4x4x32xf32>,
    return
  }
  func.func @transform_0(%arg0: i32) -> (i32, i32) {
    %c0_i32 = arith.constant 0 : i32
    %c0_i32_0 = arith.constant 0 : i32
    return %arg0, %c0_i32 : i32, i32
  }
  func.func @transform_1(%arg0: i32) -> (i32, i32) {
    %c0_i32 = arith.constant 0 : i32
    %c0_i32_0 = arith.constant 0 : i32
    %c0_i32_1 = arith.constant 0 : i32
    return %c0_i32, %c0_i32_0 : i32, i32
  }
  func.func @transform_2(%arg0: i32) -> (i32, i32) {
    %c0_i32 = arith.constant 0 : i32
    %c0_i32_0 = arith.constant 0 : i32
    %c0_i32_1 = arith.constant 0 : i32
    return %c0_i32, %c0_i32_0 : i32, i32
  }
  func.func @transform_3(%arg0: i32) -> (i32, i32, i32) {
    %c0_i32 = arith.constant 0 : i32
    %c0_i32_0 = arith.constant 0 : i32
    %c0_i32_1 = arith.constant 0 : i32
    return %arg0, %c0_i32, %c0_i32_0 : i32, i32, i32
  }
}

</mosaic_0001>

<llo_original>
// kernel: self_attention.1
$region0: #{self_attention.1}
  #allocation0 [shape = 'u32[]', space=smem, size = 0x4, offset = 0x4, fixed_abs, tag = 'smem constant byte address 0x4 - core index']
  #allocation1 [shape = 'u32[72,128]{1,0:T(1,128)}', space=vmem, size = 0x9000, scoped, tag = 'internal scratch']
  %s0 = inlined_call_operand.hbm [shape: f32[64,32], index: 0, kind: input, shape index: {}]
  %s1 = inlined_call_operand.vmem [shape: f32[32,16], index: 1, kind: input, shape index: {}]
  %s2 = inlined_call_operand.vmem [shape: f32[16,4], index: 2, kind: input, shape index: {}]
  %s3 = inlined_call_operand.hbm [shape: f32[8,4,32], index: 3, kind: output, shape index: {}]
  %s4 = sld [smem:[#allocation0]]
  $region49: #{self_attention.1} parent=0
    _
  %s6 = ssub.s32 1, %s4
  %s7 = scalar_select 0, %s6, %s4
  $region1: #{self_attention.1} parent=0
    #allocation2 [shape = 'u8[32768]{0}', space=vmem, size = 0x8000, scoped, tag = 'input window, operand 0']
    #allocation3 [shape = 's32[2]{0}', space=sflag, size = 0x8, scoped, tag = 'scoped memory for self_attention.1']
    #allocation4 [shape = 's32[2]{0}', space=sflag, size = 0x8, scoped, tag = 'scoped memory for self_attention.1']
    #allocation5 [shape = 'u8[16384]{0}', space=vmem, size = 0x4000, scoped, tag = 'output window, operand 0']
    %8 = vsyncpa [#allocation3], 0
    %s9 = scalar_lea.sflag [#allocation3], 1
    %10 = vsyncpa %s9, 0
    %11 = vsyncpa [#allocation4], 0
    %s12 = scalar_lea.sflag [#allocation4], 1
    %13 = vsyncpa %s12, 0
    loop: start=0, step=1, limit=4
    $region2: #{self_attention.1} parent=1 // loop_pre_header
      _
    $region3: #{self_attention.1} parent=1 // loop_header
      %s15 = sphi 0, %s19
      %p16 = scmp.ge.s32.totalorder %s15, 4
      %s25 = sphi 0, %s27
      %s28 = sphi 0, %s25
      %s29 = sphi 0, %s28
      %s45 = sphi 0, %s29
      %s49 = sphi 0, %s49
      %s51 = sphi 0, %s49
      %s52 = sphi 0, %s51
      %s66 = sphi 0, %s52
      %s70 = sphi 0, %s70
      %s72 = sphi 0, %s70
      %s73 = sphi 0, %s72
      %s87 = sphi 0, %s73
      %s93 = sphi 0, %s95
      %s96 = sphi 0, %s93
      %s97 = sphi 0, %s96
      %s113 = sphi 0, %s97
    $region4: #{self_attention.1} parent=1 // loop_header_branch
      %18 = sbr.rel (%p16) target = $region8
    $region5: #{self_attention.1} parent=1 // loop_body
      %s20 = ssub.s32 %s15, 1
      %s21 = ssub.s32 %s15, 2
      %s22 = sadd.s32 %s15, 1
      %s23 = ssub.s32 %s15, %s22
      %p24 = scmp.eq.s32.totalorder %s23, 0
      %s26 = sadd.s32 %s25, 1
      %s27 = scalar_select %p24, %s25, %s26
      %p30 = pneg %p24
      %p31 = scmp.eq.s32.totalorder %s15, 1
      %p32 = por %p30, %p31
      %p33 = scmp.ne.s32.totalorder %s25, %s28
      %p34 = scmp.eq.s32.totalorder %s15, 0
      %p35 = por %p33, %p34
      %p36 = scmp.ne.s32.totalorder %s25, %s28
      %p37 = scmp.eq.s32.totalorder %s20, 1
      %p38 = por %p36, %p37
      %p39 = scmp.ne.s32.totalorder %s28, %s29
      %p40 = scmp.eq.s32.totalorder %s20, 0
      %p41 = por %p39, %p40
      %p42 = scmp.ne.s32.totalorder %s28, %s29
      %p43 = scmp.eq.s32.totalorder %s21, 1
      %p44 = por %p42, %p43
      %p46 = scmp.ne.s32.totalorder %s29, %s45
      %p47 = scmp.eq.s32.totalorder %s21, 0
      %p48 = por %p46, %p47
      %s50 = sadd.s32 %s49, 1
      %p53 = scmp.eq.s32.totalorder %s15, 1
      %p54 = scmp.ne.s32.totalorder %s49, %s51
      %p55 = scmp.eq.s32.totalorder %s15, 0
      %p56 = por %p54, %p55
      %p57 = scmp.ne.s32.totalorder %s49, %s51
      %p58 = scmp.eq.s32.totalorder %s20, 1
      %p59 = por %p57, %p58
      %p60 = scmp.ne.s32.totalorder %s51, %s52
      %p61 = scmp.eq.s32.totalorder %s20, 0
      %p62 = por %p60, %p61
      %p63 = scmp.ne.s32.totalorder %s51, %s52
      %p64 = scmp.eq.s32.totalorder %s21, 1
      %p65 = por %p63, %p64
      %p67 = scmp.ne.s32.totalorder %s52, %s66
      %p68 = scmp.eq.s32.totalorder %s21, 0
      %p69 = por %p67, %p68
      %s71 = sadd.s32 %s70, 1
      %p74 = scmp.eq.s32.totalorder %s15, 1
      %p75 = scmp.ne.s32.totalorder %s70, %s72
      %p76 = scmp.eq.s32.totalorder %s15, 0
      %p77 = por %p75, %p76
      %p78 = scmp.ne.s32.totalorder %s70, %s72
      %p79 = scmp.eq.s32.totalorder %s20, 1
      %p80 = por %p78, %p79
      %p81 = scmp.ne.s32.totalorder %s72, %s73
      %p82 = scmp.eq.s32.totalorder %s20, 0
      %p83 = por %p81, %p82
      %p84 = scmp.ne.s32.totalorder %s72, %s73
      %p85 = scmp.eq.s32.totalorder %s21, 1
      %p86 = por %p84, %p85
      %p88 = scmp.ne.s32.totalorder %s73, %s87
      %p89 = scmp.eq.s32.totalorder %s21, 0
      %p90 = por %p88, %p89
      %s91 = ssub.s32 %s15, %s22
      %p92 = scmp.eq.s32.totalorder %s91, 0
      %s94 = sadd.s32 %s93, 1
      %s95 = scalar_select %p92, %s93, %s94
      %p98 = pneg %p92
      %p99 = scmp.eq.s32.totalorder %s15, 1
      %p100 = por %p98, %p99
      %p101 = scmp.ne.s32.totalorder %s93, %s96
      %p102 = scmp.eq.s32.totalorder %s15, 0
      %p103 = por %p101, %p102
      %p104 = scmp.ne.s32.totalorder %s93, %s96
      %p105 = scmp.eq.s32.totalorder %s20, 1
      %p106 = por %p104, %p105
      %p107 = scmp.ne.s32.totalorder %s96, %s97
      %p108 = scmp.eq.s32.totalorder %s20, 0
      %p109 = por %p107, %p108
      %p110 = scmp.ne.s32.totalorder %s96, %s97
      %p111 = scmp.eq.s32.totalorder %s21, 1
      %p112 = por %p110, %p111
      %p114 = scmp.ne.s32.totalorder %s97, %s113
      %p115 = scmp.eq.s32.totalorder %s21, 0
      %p116 = por %p114, %p115
      %p117 = scmp.le.s32.totalorder 1, %s15
      %p118 = scmp.lt.s32.totalorder %s15, 3
      %p119 = pnand %p117, %p118
      %p120 = pneg %p119
      // Predicated region
      $region9: #{self_attention.1} parent=5 // pred_check
        _
      $region10: #{self_attention.1} parent=5 // pred_check_branch
        %122 = sbr.rel (%p119) target = $region12
      $region11: #{self_attention.1} parent=5 // pred_region
        %s123 = ssub.s32 %s15, 1
        // Predicated region
        $region13: #{self_attention.1} parent=11 // pred_check
          %p124 = pneg %p62
        $region14: #{self_attention.1} parent=11 // pred_check_branch
          %126 = sbr.rel (%p124) target = $region16
        $region15: #{self_attention.1} parent=11 // pred_region
          _
        $region16: #{self_attention.1} parent=11 // pred_fallthru
          _
        // Predicated region
        $region17: #{self_attention.1} parent=11 // pred_check
          %p127 = pneg %p83
        $region18: #{self_attention.1} parent=11 // pred_check_branch
          %129 = sbr.rel (%p127) target = $region20
        $region19: #{self_attention.1} parent=11 // pred_region
          _
        $region20: #{self_attention.1} parent=11 // pred_fallthru
          _
      $region12: #{self_attention.1} parent=5 // pred_fallthru
        _
      %p130 = scmp.lt.s32.totalorder %s15, 2
      // Predicated region
      $region21: #{self_attention.1} parent=5 // pred_check
        %p131 = pneg %p130
      $region22: #{self_attention.1} parent=5 // pred_check_branch
        %133 = sbr.rel (%p131) target = $region24
      $region23: #{self_attention.1} parent=5 // pred_region
        // Predicated region
        $region25: #{self_attention.1} parent=23 // pred_check
          %p134 = pneg %p35
        $region26: #{self_attention.1} parent=23 // pred_check_branch
          %136 = sbr.rel (%p134) target = $region28
        $region27: #{self_attention.1} parent=23 // pred_region
          %s137 = sand.u32 %s25, 1
          %s138 = scalar_lea.sflag [#allocation3], %s137
          %s139 = sand.u32 %s25, 1
          %s140 = smul.addr %s139, 32
          %s141 = scalar_lea.vmem [#allocation2], %s140
          %s142 = smul.u32 4, %s15
          %144 = vsyncadd %s138, 0
          %s145 = smul.addr %s142, 8
          %s146 = scalar_lea.hbm %s0, %s145
          %s147 = sshll.u32 %s146, 4
          %s148 = int_to_ptr.hbm [resolvable:$true] %s147
          %s149 = sshll.u32 %s141, 4
          %s150 = int_to_ptr.vmem [resolvable:$true] %s149
          %155 = dma.hbm_to_vmem [thread:$0]  %s148, 512, %s150, %s138, 128, 128, 8
        $region28: #{self_attention.1} parent=23 // pred_fallthru
          _
      $region24: #{self_attention.1} parent=5 // pred_fallthru
        _
      %p156 = scmp.le.s32.totalorder 1, %s15
      %p157 = scmp.lt.s32.totalorder %s15, 3
      %p158 = pnand %p156, %p157
      %p159 = pneg %p158
      // Predicated region
      $region29: #{self_attention.1} parent=5 // pred_check
        _
      $region30: #{self_attention.1} parent=5 // pred_check_branch
        %161 = sbr.rel (%p158) target = $region32
      $region31: #{self_attention.1} parent=5 // pred_region
        %s162 = ssub.s32 %s15, 1
        %s163 = sand.u32 %s28, 1
        %s164 = scalar_lea.sflag [#allocation3], %s163
        %s165 = sand.u32 %s28, 1
        %s166 = smul.addr %s165, 32
        %s167 = scalar_lea.vmem [#allocation2], %s166
        // Predicated region
        $region33: #{self_attention.1} parent=31 // pred_check
          %p168 = pneg %p41
        $region34: #{self_attention.1} parent=31 // pred_check_branch
          %170 = sbr.rel (%p168) target = $region36
        $region35: #{self_attention.1} parent=31 // pred_region
          %172 = dma.done %s164, 512
        $region36: #{self_attention.1} parent=31 // pred_fallthru
          _
        %s173 = sand.u32 %s28, 1
        %s174 = scalar_lea.sflag [#allocation3], %s173
        %s175 = sand.u32 %s28, 1
        %s176 = smul.addr %s175, 32
        %s177 = scalar_lea.vmem [#allocation2], %s176
        %p178 = pneg %p41
        %p179 = pneg %p38
        %p180 = pneg %p62
        %p181 = pneg %p59
        %p182 = pneg %p83
        %p183 = pneg %p80
        %p184 = pneg %p109
        %p185 = pneg %p106
        %s186 = sand.u32 %s96, 1
        %s187 = scalar_lea.sflag [#allocation4], %s186
        %s188 = sand.u32 %s96, 1
        %s189 = smul.addr %s188, 16
        %s190 = scalar_lea.vmem [#allocation5], %s189
        %s191 = smul.u32 4, %s20
        %s192 = smul.u32 4, %s20
        %v193 = vld [vmem:[%s167] sm:$0xff]
        %v194 = vld [vmem:[%s167 + $0x8] sm:$0xff]
        %v195 = vld [vmem:[%s167 + $0x10] sm:$0xff]
        %v196 = vld [vmem:[%s167 + $0x18] sm:$0xff]
        %v197 = vld [vmem:[%s1] sm:$0xff]
        %v198 = vld [vmem:[%s1 + $0x8] sm:$0xff]
        %v199 = vld [vmem:[%s1 + $0x10] sm:$0xff]
        %v200 = vld [vmem:[%s1 + $0x18] sm:$0xff]
        %v201 = vld [vmem:[%s2] sm:$0xff]
        %v202 = vld [vmem:[%s2 + $0x8] sm:$0xff]
        %vm203 = vcmask 261120
        %v205 = vsel %vm203, %v193, 0
        %v208 = vsel %vm203, %v194, 0
        %v211 = vsel %vm203, %v195, 0
        %v214 = vsel %vm203, %v196, 0
        %216 = vmatpush.msra.mxu0 0.0
        %217 = vmatpush.msra.mxu0 0.0
        %218 = vmatpush.msra.mxu0 0.0
        %219 = vmatpush.msra.mxu0 0.0
        %220 = vmatpush.msra.mxu0 0.0
        %221 = vmatpush.msra.mxu0 0.0
        %222 = vmatpush.msra.mxu0 0.0
        %223 = vmatpush.msra.mxu0 0.0
        %224 = vmatpush.msra.mxu0 0.0
        %225 = vmatpush.msra.mxu0 0.0
        %226 = vmatpush.msra.mxu0 0.0
        %227 = vmatpush.msra.mxu0 0.0
        %228 = vmatpush.msra.mxu0 %v200
        %229 = vmatpush.msra.mxu0 %v199
        %230 = vmatpush.msra.mxu0 %v198
        %231 = vmatpush.msra.mxu0 %v197
        %232 = vmatmul.f32.gmra.mxu0 %v205
        %v233 = vpop.f32.mrf.mxu0
        %v234 = vadd.f32 0.0, %v233
        %235 = vmatmul.f32.gmra.mxu0 %v208
        %v236 = vpop.f32.mrf.mxu0
        %v237 = vadd.f32 0.0, %v236
        %238 = vmatmul.f32.gmra.mxu0 %v211
        %v239 = vpop.f32.mrf.mxu0
        %v240 = vadd.f32 0.0, %v239
        %241 = vmatmul.f32.gmra.mxu0 %v214
        %v242 = vpop.f32.mrf.mxu0
        %v243 = vadd.f32 0.0, %v242
        %244 = vdwg.mxu0
        %v245 = vtanh.pop %v234
        %v246 = vtanh.pop %v237
        %v247 = vtanh.pop %v240
        %v248 = vtanh.pop %v243
        %vm249 = vcmask 130048
        %v251 = vsel %vm249, %v245, 0
        %v254 = vsel %vm249, %v246, 0
        %v257 = vsel %vm249, %v247, 0
        %v260 = vsel %vm249, %v248, 0
        %262 = vmatpush.msra.mxu0 0.0
        %263 = vmatpush.msra.mxu0 0.0
        %264 = vmatpush.msra.mxu0 0.0
        %265 = vmatpush.msra.mxu0 0.0
        %266 = vmatpush.msra.mxu0 0.0
        %267 = vmatpush.msra.mxu0 0.0
        %268 = vmatpush.msra.mxu0 0.0
        %269 = vmatpush.msra.mxu0 0.0
        %270 = vmatpush.msra.mxu0 0.0
        %271 = vmatpush.msra.mxu0 0.0
        %272 = vmatpush.msra.mxu0 0.0
        %273 = vmatpush.msra.mxu0 0.0
        %274 = vmatpush.msra.mxu0 0.0
        %275 = vmatpush.msra.mxu0 0.0
        %276 = vmatpush.msra.mxu0 %v202
        %277 = vmatpush.msra.mxu0 %v201
        %278 = vmatmul.f32.gmra.mxu0 %v251
        %v279 = vpop.f32.mrf.mxu0
        %v280 = vadd.f32 0.0, %v279
        %281 = vmatmul.f32.gmra.mxu0 %v254
        %v282 = vpop.f32.mrf.mxu0
        %v283 = vadd.f32 0.0, %v282
        %284 = vmatmul.f32.gmra.mxu0 %v257
        %v285 = vpop.f32.mrf.mxu0
        %v286 = vadd.f32 0.0, %v285
        %287 = vmatmul.f32.gmra.mxu0 %v260
        %v288 = vpop.f32.mrf.mxu0
        %v289 = vadd.f32 0.0, %v288
        %290 = vdwg.mxu0
        %vm291 = vcmask 31744
        %v292 = vsel %vm291, %v280, -inf
        %v293 = vrot.slane %v292, 4
        %v294 = vmax.f32 %v292, %v293
        %v295 = vrot.slane %v294, 2
        %v296 = vmax.f32 %v294, %v295
        %v297 = vrot.slane %v296, 1
        %v298 = vmax.f32 %v296, %v297
        %v299 = vsel %vm291, %v283, -inf
        %v300 = vrot.slane %v299, 4
        %v301 = vmax.f32 %v299, %v300
        %v302 = vrot.slane %v301, 2
        %v303 = vmax.f32 %v301, %v302
        %v304 = vrot.slane %v303, 1
        %v305 = vmax.f32 %v303, %v304
        %v306 = vsel %vm291, %v286, -inf
        %v307 = vrot.slane %v306, 4
        %v308 = vmax.f32 %v306, %v307
        %v309 = vrot.slane %v308, 2
        %v310 = vmax.f32 %v308, %v309
        %v311 = vrot.slane %v310, 1
        %v312 = vmax.f32 %v310, %v311
        %v313 = vsel %vm291, %v289, -inf
        %v314 = vrot.slane %v313, 4
        %v315 = vmax.f32 %v313, %v314
        %v316 = vrot.slane %v315, 2
        %v317 = vmax.f32 %v315, %v316
        %v318 = vrot.slane %v317, 1
        %v319 = vmax.f32 %v317, %v318
        %v320 = vsub.f32 %v280, %v298
        %v321 = vsub.f32 %v283, %v305
        %v322 = vsub.f32 %v286, %v312
        %v323 = vsub.f32 %v289, %v319
        %v324 = vmul.f32 %v320, 1.442695
        %v325 = vpow.pop %v324
        %v326 = vmul.f32 %v321, 1.442695
        %v327 = vpow.pop %v326
        %v328 = vmul.f32 %v322, 1.442695
        %v329 = vpow.pop %v328
        %v330 = vmul.f32 %v323, 1.442695
        %v331 = vpow.pop %v330
        %v332 = vsel %vm291, %v325, 0.0
        %v333 = vrot.slane %v332, 4
        %v334 = vadd.f32 %v332, %v333
        %v335 = vrot.slane %v334, 2
        %v336 = vadd.f32 %v334, %v335
        %v337 = vrot.slane %v336, 1
        %v338 = vadd.f32 %v336, %v337
        %v339 = vsel %vm291, %v327, 0.0
        %v340 = vrot.slane %v339, 4
        %v341 = vadd.f32 %v339, %v340
        %v342 = vrot.slane %v341, 2
        %v343 = vadd.f32 %v341, %v342
        %v344 = vrot.slane %v343, 1
        %v345 = vadd.f32 %v343, %v344
        %v346 = vsel %vm291, %v329, 0.0
        %v347 = vrot.slane %v346, 4
        %v348 = vadd.f32 %v346, %v347
        %v349 = vrot.slane %v348, 2
        %v350 = vadd.f32 %v348, %v349
        %v351 = vrot.slane %v350, 1
        %v352 = vadd.f32 %v350, %v351
        %v353 = vsel %vm291, %v331, 0.0
        %v354 = vrot.slane %v353, 4
        %v355 = vadd.f32 %v353, %v354
        %v356 = vrot.slane %v355, 2
        %v357 = vadd.f32 %v355, %v356
        %v358 = vrot.slane %v357, 1
        %v359 = vadd.f32 %v357, %v358
        %v360 = vrcp.pop %v338
        %v361 = vrcp.pop %v345
        %v362 = vrcp.pop %v352
        %v363 = vrcp.pop %v359
        %v364 = vmul.f32 %v325, %v360
        %v365 = vmul.f32 %v327, %v361
        %v366 = vmul.f32 %v329, %v362
        %v367 = vmul.f32 %v331, %v363
        %368 = vxpose.xlu0.b32.start [1/16] %v364, 128
        %369 = vxpose.xlu0.b32.cont [2/16] 0.0, 128
        %370 = vxpose.xlu0.b32.cont [3/16] 0.0, 128
        %371 = vxpose.xlu0.b32.cont [4/16] 0.0, 128
        %372 = vxpose.xlu0.b32.cont [5/16] 0.0, 128
        %373 = vxpose.xlu0.b32.cont [6/16] 0.0, 128
        %374 = vxpose.xlu0.b32.cont [7/16] 0.0, 128
        %375 = vxpose.xlu0.b32.cont [8/16] 0.0, 128
        %376 = vxpose.xlu0.b32.cont [9/16] 0.0, 128
        %377 = vxpose.xlu0.b32.cont [10/16] 0.0, 128
        %378 = vxpose.xlu0.b32.cont [11/16] 0.0, 128
        %379 = vxpose.xlu0.b32.cont [12/16] 0.0, 128
        %380 = vxpose.xlu0.b32.cont [13/16] 0.0, 128
        %381 = vxpose.xlu0.b32.cont [14/16] 0.0, 128
        %382 = vxpose.xlu0.b32.cont [15/16] 0.0, 128
        %383 = vxpose.xlu0.b32.end [16/16] 0.0, 128
        %v384 = vpop.trf.xlu0
        %v385 = vpop.trf.xlu0
        %v386 = vpop.trf.xlu0
        %v387 = vpop.trf.xlu0
        %v388 = vpop.trf.xlu0
        %v389 = vpop.trf.xlu0
        %v390 = vpop.trf.xlu0
        %v391 = vpop.trf.xlu0
        %v392 = vpop.trf.xlu0
        %v393 = vpop.trf.xlu0
        %v394 = vpop.trf.xlu0
        %v395 = vpop.trf.xlu0
        %v396 = vpop.trf.xlu0
        %v397 = vpop.trf.xlu0
        %v398 = vpop.trf.xlu0
        %v399 = vpop.trf.xlu0
        %vm400 = vcmask 64512
        %v402 = vsel %vm400, %v384, 0
        %404 = vmatpush.msra.mxu0 0.0
        %405 = vmatpush.msra.mxu0 0.0
        %406 = vmatpush.msra.mxu0 0.0
        %407 = vmatpush.msra.mxu0 0.0
        %408 = vmatpush.msra.mxu0 0.0
        %409 = vmatpush.msra.mxu0 0.0
        %410 = vmatpush.msra.mxu0 0.0
        %411 = vmatpush.msra.mxu0 0.0
        %412 = vmatpush.msra.mxu0 0.0
        %413 = vmatpush.msra.mxu0 0.0
        %414 = vmatpush.msra.mxu0 0.0
        %415 = vmatpush.msra.mxu0 0.0
        %416 = vmatpush.msra.mxu0 0.0
        %417 = vmatpush.msra.mxu0 0.0
        %418 = vmatpush.msra.mxu0 0.0
        %419 = vmatpush.msra.mxu0 %v193
        %420 = vmatmul.f32.gmra.mxu0 %v402
        %v421 = vpop.f32.mrf.mxu0
        %v422 = vadd.f32 0.0, %v421
        %423 = vdwg.mxu0
        %424 = vxpose.xlu0.b32.start [1/16] %v365, 128
        %425 = vxpose.xlu0.b32.cont [2/16] 0.0, 128
        %426 = vxpose.xlu0.b32.cont [3/16] 0.0, 128
        %427 = vxpose.xlu0.b32.cont [4/16] 0.0, 128
        %428 = vxpose.xlu0.b32.cont [5/16] 0.0, 128
        %429 = vxpose.xlu0.b32.cont [6/16] 0.0, 128
        %430 = vxpose.xlu0.b32.cont [7/16] 0.0, 128
        %431 = vxpose.xlu0.b32.cont [8/16] 0.0, 128
        %432 = vxpose.xlu0.b32.cont [9/16] 0.0, 128
        %433 = vxpose.xlu0.b32.cont [10/16] 0.0, 128
        %434 = vxpose.xlu0.b32.cont [11/16] 0.0, 128
        %435 = vxpose.xlu0.b32.cont [12/16] 0.0, 128
        %436 = vxpose.xlu0.b32.cont [13/16] 0.0, 128
        %437 = vxpose.xlu0.b32.cont [14/16] 0.0, 128
        %438 = vxpose.xlu0.b32.cont [15/16] 0.0, 128
        %439 = vxpose.xlu0.b32.end [16/16] 0.0, 128
        %v440 = vpop.trf.xlu0
        %v441 = vpop.trf.xlu0
        %v442 = vpop.trf.xlu0
        %v443 = vpop.trf.xlu0
        %v444 = vpop.trf.xlu0
        %v445 = vpop.trf.xlu0
        %v446 = vpop.trf.xlu0
        %v447 = vpop.trf.xlu0
        %v448 = vpop.trf.xlu0
        %v449 = vpop.trf.xlu0
        %v450 = vpop.trf.xlu0
        %v451 = vpop.trf.xlu0
        %v452 = vpop.trf.xlu0
        %v453 = vpop.trf.xlu0
        %v454 = vpop.trf.xlu0
        %v455 = vpop.trf.xlu0
        %v457 = vsel %vm400, %v440, 0
        %459 = vmatpush.msra.mxu0 0.0
        %460 = vmatpush.msra.mxu0 0.0
        %461 = vmatpush.msra.mxu0 0.0
        %462 = vmatpush.msra.mxu0 0.0
        %463 = vmatpush.msra.mxu0 0.0
        %464 = vmatpush.msra.mxu0 0.0
        %465 = vmatpush.msra.mxu0 0.0
        %466 = vmatpush.msra.mxu0 0.0
        %467 = vmatpush.msra.mxu0 0.0
        %468 = vmatpush.msra.mxu0 0.0
        %469 = vmatpush.msra.mxu0 0.0
        %470 = vmatpush.msra.mxu0 0.0
        %471 = vmatpush.msra.mxu0 0.0
        %472 = vmatpush.msra.mxu0 0.0
        %473 = vmatpush.msra.mxu0 0.0
        %474 = vmatpush.msra.mxu0 %v194
        %475 = vmatmul.f32.gmra.mxu0 %v457
        %v476 = vpop.f32.mrf.mxu0
        %v477 = vadd.f32 0.0, %v476
        %478 = vdwg.mxu0
        %479 = vxpose.xlu0.b32.start [1/16] %v366, 128
        %480 = vxpose.xlu0.b32.cont [2/16] 0.0, 128
        %481 = vxpose.xlu0.b32.cont [3/16] 0.0, 128
        %482 = vxpose.xlu0.b32.cont [4/16] 0.0, 128
        %483 = vxpose.xlu0.b32.cont [5/16] 0.0, 128
        %484 = vxpose.xlu0.b32.cont [6/16] 0.0, 128
        %485 = vxpose.xlu0.b32.cont [7/16] 0.0, 128
        %486 = vxpose.xlu0.b32.cont [8/16] 0.0, 128
        %487 = vxpose.xlu0.b32.cont [9/16] 0.0, 128
        %488 = vxpose.xlu0.b32.cont [10/16] 0.0, 128
        %489 = vxpose.xlu0.b32.cont [11/16] 0.0, 128
        %490 = vxpose.xlu0.b32.cont [12/16] 0.0, 128
        %491 = vxpose.xlu0.b32.cont [13/16] 0.0, 128
        %492 = vxpose.xlu0.b32.cont [14/16] 0.0, 128
        %493 = vxpose.xlu0.b32.cont [15/16] 0.0, 128
        %494 = vxpose.xlu0.b32.end [16/16] 0.0, 128
        %v495 = vpop.trf.xlu0
        %v496 = vpop.trf.xlu0
        %v497 = vpop.trf.xlu0
        %v498 = vpop.trf.xlu0
        %v499 = vpop.trf.xlu0
        %v500 = vpop.trf.xlu0
        %v501 = vpop.trf.xlu0
        %v502 = vpop.trf.xlu0
        %v503 = vpop.trf.xlu0
        %v504 = vpop.trf.xlu0
        %v505 = vpop.trf.xlu0
        %v506 = vpop.trf.xlu0
        %v507 = vpop.trf.xlu0
        %v508 = vpop.trf.xlu0
        %v509 = vpop.trf.xlu0
        %v510 = vpop.trf.xlu0
        %v512 = vsel %vm400, %v495, 0
        %514 = vmatpush.msra.mxu0 0.0
        %515 = vmatpush.msra.mxu0 0.0
        %516 = vmatpush.msra.mxu0 0.0
        %517 = vmatpush.msra.mxu0 0.0
        %518 = vmatpush.msra.mxu0 0.0
        %519 = vmatpush.msra.mxu0 0.0
        %520 = vmatpush.msra.mxu0 0.0
        %521 = vmatpush.msra.mxu0 0.0
        %522 = vmatpush.msra.mxu0 0.0
        %523 = vmatpush.msra.mxu0 0.0
        %524 = vmatpush.msra.mxu0 0.0
        %525 = vmatpush.msra.mxu0 0.0
        %526 = vmatpush.msra.mxu0 0.0
        %527 = vmatpush.msra.mxu0 0.0
        %528 = vmatpush.msra.mxu0 0.0
        %529 = vmatpush.msra.mxu0 %v195
        %530 = vmatmul.f32.gmra.mxu0 %v512
        %v531 = vpop.f32.mrf.mxu0
        %v532 = vadd.f32 0.0, %v531
        %533 = vdwg.mxu0
        %534 = vxpose.xlu0.b32.start [1/16] %v367, 128
        %535 = vxpose.xlu0.b32.cont [2/16] 0.0, 128
        %536 = vxpose.xlu0.b32.cont [3/16] 0.0, 128
        %537 = vxpose.xlu0.b32.cont [4/16] 0.0, 128
        %538 = vxpose.xlu0.b32.cont [5/16] 0.0, 128
        %539 = vxpose.xlu0.b32.cont [6/16] 0.0, 128
        %540 = vxpose.xlu0.b32.cont [7/16] 0.0, 128
        %541 = vxpose.xlu0.b32.cont [8/16] 0.0, 128
        %542 = vxpose.xlu0.b32.cont [9/16] 0.0, 128
        %543 = vxpose.xlu0.b32.cont [10/16] 0.0, 128
        %544 = vxpose.xlu0.b32.cont [11/16] 0.0, 128
        %545 = vxpose.xlu0.b32.cont [12/16] 0.0, 128
        %546 = vxpose.xlu0.b32.cont [13/16] 0.0, 128
        %547 = vxpose.xlu0.b32.cont [14/16] 0.0, 128
        %548 = vxpose.xlu0.b32.cont [15/16] 0.0, 128
        %549 = vxpose.xlu0.b32.end [16/16] 0.0, 128
        %v550 = vpop.trf.xlu0
        %v551 = vpop.trf.xlu0
        %v552 = vpop.trf.xlu0
        %v553 = vpop.trf.xlu0
        %v554 = vpop.trf.xlu0
        %v555 = vpop.trf.xlu0
        %v556 = vpop.trf.xlu0
        %v557 = vpop.trf.xlu0
        %v558 = vpop.trf.xlu0
        %v559 = vpop.trf.xlu0
        %v560 = vpop.trf.xlu0
        %v561 = vpop.trf.xlu0
        %v562 = vpop.trf.xlu0
        %v563 = vpop.trf.xlu0
        %v564 = vpop.trf.xlu0
        %v565 = vpop.trf.xlu0
        %v567 = vsel %vm400, %v550, 0
        %569 = vmatpush.msra.mxu0 0.0
        %570 = vmatpush.msra.mxu0 0.0
        %571 = vmatpush.msra.mxu0 0.0
        %572 = vmatpush.msra.mxu0 0.0
        %573 = vmatpush.msra.mxu0 0.0
        %574 = vmatpush.msra.mxu0 0.0
        %575 = vmatpush.msra.mxu0 0.0
        %576 = vmatpush.msra.mxu0 0.0
        %577 = vmatpush.msra.mxu0 0.0
        %578 = vmatpush.msra.mxu0 0.0
        %579 = vmatpush.msra.mxu0 0.0
        %580 = vmatpush.msra.mxu0 0.0
        %581 = vmatpush.msra.mxu0 0.0
        %582 = vmatpush.msra.mxu0 0.0
        %583 = vmatpush.msra.mxu0 0.0
        %584 = vmatpush.msra.mxu0 %v196
        %585 = vmatmul.f32.gmra.mxu0 %v567
        %v586 = vpop.f32.mrf.mxu0
        %v587 = vadd.f32 0.0, %v586
        %588 = vdwg.mxu0
        %vm589 = vcmask 257024
        %590 = vst.msk [vmem:[%s190] sm:$0xf] %vm589, %v422
        %591 = vst.msk [vmem:[%s190 + $0x4] sm:$0xf] %vm589, %v477
        %592 = vst.msk [vmem:[%s190 + $0x8] sm:$0xf] %vm589, %v532
        %593 = vst.msk [vmem:[%s190 + $0xc] sm:$0xf] %vm589, %v587
        %s594 = sand.u32 %s96, 1
        %s595 = scalar_lea.sflag [#allocation4], %s594
        %s596 = sand.u32 %s96, 1
        %s597 = smul.addr %s596, 16
        %s598 = scalar_lea.vmem [#allocation5], %s597
        // Predicated region
        $region37: #{self_attention.1} parent=31 // pred_check
          %p599 = pneg %p106
        $region38: #{self_attention.1} parent=31 // pred_check_branch
          %601 = sbr.rel (%p599) target = $region40
        $region39: #{self_attention.1} parent=31 // pred_region
          %s602 = smul.u32 4, %s20
          %604 = vsyncadd %s595, 0
          %s605 = smul.addr %s602, 4
          %s606 = scalar_lea.hbm %s3, %s605
          %s607 = sshll.u32 %s598, 4
          %s608 = int_to_ptr.vmem [resolvable:$true] %s607
          %s609 = sshll.u32 %s606, 4
          %s610 = int_to_ptr.hbm [resolvable:$true] %s609
          %615 = dma.vmem_to_hbm [thread:$0]  %s608, 256, %s610, %s595, 64, 64, 4
        $region40: #{self_attention.1} parent=31 // pred_fallthru
          _
      $region32: #{self_attention.1} parent=5 // pred_fallthru
        _
      %p616 = scmp.le.s32.totalorder 2, %s15
      // Predicated region
      $region41: #{self_attention.1} parent=5 // pred_check
        %p617 = pneg %p616
      $region42: #{self_attention.1} parent=5 // pred_check_branch
        %619 = sbr.rel (%p617) target = $region44
      $region43: #{self_attention.1} parent=5 // pred_region
        %s620 = ssub.s32 %s15, 2
        // Predicated region
        $region45: #{self_attention.1} parent=43 // pred_check
          %p621 = pneg %p112
        $region46: #{self_attention.1} parent=43 // pred_check_branch
          %623 = sbr.rel (%p621) target = $region48
        $region47: #{self_attention.1} parent=43 // pred_region
          %s624 = sand.u32 %s97, 1
          %s625 = scalar_lea.sflag [#allocation4], %s624
          %s626 = sand.u32 %s97, 1
          %s627 = smul.addr %s626, 16
          %s628 = scalar_lea.vmem [#allocation5], %s627
          %630 = dma.done %s625, 256
        $region48: #{self_attention.1} parent=43 // pred_fallthru
          _
      $region44: #{self_attention.1} parent=5 // pred_fallthru
        _
    $region6: #{self_attention.1} parent=1 // loop_footer
      %s19 = sadd.s32 1, %s15
    $region7: #{self_attention.1} parent=1 // loop_footer_branch
      %14 = sbr.rel target = $region3
    $region8: #{self_attention.1} parent=1 // loop_exit
      _
    %631 = vsyncpa [#allocation3], 1
    %s632 = scalar_lea.sflag [#allocation3], 1
    %633 = vsyncpa %s632, 1
    %634 = vsyncpa [#allocation4], 1
    %s635 = scalar_lea.sflag [#allocation4], 1
    %636 = vsyncpa %s635, 1

</llo_original>
